<compile_context>
chip_gen: v5e
topology: v5e:2x2
jax: 0.10.0
libtpu: 0.0.40
codegen_flags: <defaults>
</compile_context>

<pallas_src>
import functools
import math

import jax
import jax.numpy as jnp
import numpy as np
from jax import lax
from jax.experimental import pallas as pl
from jax.experimental.pallas import tpu as pltpu

_INV_SQRT2 = 1.0 / math.sqrt(2.0)
_ROW_TILE_CAP = 4096          # conv kernel row-tile cap (per-step traffic stays tiny)


def _round_up(x, m):
    return ((x + m - 1) // m) * m


def _vmem_limit_bytes():
    # generation-aware VMEM budget (64 MiB physical on v7x, 128 MiB on v5e/v6e)
    try:
        cap = int(pltpu.get_tpu_info().vmem_capacity_bytes)
        if cap <= 0:
            raise ValueError
    except Exception:
        cap = 128 * 1024 * 1024
    return int(min(100 * 1024 * 1024, (cap * 3) // 4))


# ---------------------------------------------------------------------------
# Kernel 1: conv as im2col-matmul in bf16 with f32 accumulation, fused with per-block
# partial sum / sum-sq (training-mode BatchNorm2d batch statistics).  Each grid step
# writes its own conv tile and its own stats rows -> grid is fully parallel.
# ---------------------------------------------------------------------------
def _conv_stats_kernel(p_ref, w_ref, out_ref, psum_ref, pssq_ref):
    acc = jnp.dot(p_ref[...], w_ref[...], preferred_element_type=jnp.float32)
    out_ref[...] = acc.astype(out_ref.dtype)           # bf16 writeback (halves HBM)
    # rows beyond M are zero-padded patches (and there is no bias add), so they
    # contribute exactly 0 to both partials -> no row mask needed.
    psum_ref[...] = jnp.broadcast_to(jnp.sum(acc, axis=0, keepdims=True),
                                     psum_ref.shape)
    pssq_ref[...] = jnp.broadcast_to(jnp.sum(acc * acc, axis=0, keepdims=True),
                                     pssq_ref.shape)


def conv_and_stats(patches_bf16, w_bf16, *, tm):
    m_pad, k_pad = patches_bf16.shape
    c = w_bf16.shape[1]
    nblk = m_pad // tm
    return pl.pallas_call(
        _conv_stats_kernel,
        out_shape=(
            jax.ShapeDtypeStruct((m_pad, c), jnp.bfloat16),
            jax.ShapeDtypeStruct((nblk * 8, c), jnp.float32),
            jax.ShapeDtypeStruct((nblk * 8, c), jnp.float32),
        ),
        grid_spec=pltpu.PrefetchScalarGridSpec(
            num_scalar_prefetch=0,
            grid=(nblk,),
            in_specs=[
                pl.BlockSpec((tm, k_pad), lambda i: (i, 0)),
                pl.BlockSpec((k_pad, c), lambda i: (0, 0)),
            ],
            out_specs=[
                pl.BlockSpec((tm, c), lambda i: (i, 0)),
                pl.BlockSpec((8, c), lambda i: (i, 0)),
                pl.BlockSpec((8, c), lambda i: (i, 0)),
            ],
        ),
        compiler_params=pltpu.CompilerParams(
            dimension_semantics=("parallel",),
            vmem_limit_bytes=_vmem_limit_bytes()),
    )(patches_bf16, w_bf16)


# ---------------------------------------------------------------------------
# Kernel 2: fused BatchNorm-apply + exact GELU + MaxPool(3x3, stride s).  The input is
# the -inf padded conv map in an s x s polyphase layout, so every tap is a contiguous
# static slice.  Per tap only y = w*scale+shift is computed (f32); the pooled value is
# max(GELU(y_max), GELU(y_min)) -> 2 erf per output instead of 9.
# ---------------------------------------------------------------------------
def _bn_gelu_pool_kernel(ph_ref, scale_ref, shift_ref, o_ref, *, s, po, pw):
    scale = scale_ref[...].astype(jnp.float32)          # (1, tc)
    shift = shift_ref[...].astype(jnp.float32)
    tc = scale.shape[-1]
    neg = jnp.float32(-jnp.inf)
    pos = jnp.float32(jnp.inf)
    y_max = jnp.full((po, pw, tc), -jnp.inf, dtype=jnp.float32)
    y_min = jnp.full((po, pw, tc), jnp.inf, dtype=jnp.float32)
    # static 3x3 tap loop; temporaries per tap die immediately (only the two extrema
    # stay live), so the unroll stays register/VMEM friendly.
    for dy in range(3):
        for dx in range(3):
            phase = (dy % s) * s + (dx % s)
            oy, ox = dy // s, dx // s
            w = ph_ref[phase, oy:oy + po, ox:ox + pw, :].astype(jnp.float32)
            valid = w > neg                              # False only on -inf padding
            y = jnp.where(valid, w, 0.0) * scale + shift
            y_max = jnp.maximum(y_max, jnp.where(valid, y, neg))
            y_min = jnp.minimum(y_min, jnp.where(valid, y, pos))

    # exact GELU is unimodal (single minimum near y ~ -0.7518): the max of GELU over
    # the valid taps is attained at either the largest or the smallest y.  The centre
    # tap of a 3x3/pad-1 window is always valid, so y_max / y_min are always finite.
    def _gelu(v):
        return 0.5 * v * (1.0 + lax.erf(v * _INV_SQRT2))

    o_ref[0] = jnp.maximum(_gelu(y_max), _gelu(y_min))


def bn_gelu_maxpool(ph4, scale, shift, *, s, po, pw, tc, n):
    nphase = s * s
    _, hq, wq, c = ph4.shape
    ncb = c // tc
    kern = functools.partial(_bn_gelu_pool_kernel, s=s, po=po, pw=pw)
    return pl.pallas_call(
        kern,
        out_shape=jax.ShapeDtypeStruct((n, po, pw, c), jnp.float32),
        grid_spec=pltpu.PrefetchScalarGridSpec(
            num_scalar_prefetch=0,
            grid=(n, ncb),
            in_specs=[
                pl.BlockSpec((nphase, hq, wq, tc), lambda b, cb: (b, 0, 0, cb)),
                pl.BlockSpec((1, tc), lambda b, cb: (0, cb)),
                pl.BlockSpec((1, tc), lambda b, cb: (0, cb)),
            ],
            out_specs=pl.BlockSpec((1, po, pw, tc), lambda b, cb: (b, 0, 0, cb)),
        ),
        compiler_params=pltpu.CompilerParams(
            dimension_semantics=("parallel", "parallel"),
            vmem_limit_bytes=_vmem_limit_bytes()),
    )(ph4, scale, shift)


# ---------------------------------------------------------------------------
# ConvEmbed module (deterministic in-script parameter init).
# ---------------------------------------------------------------------------
class ConvEmbedPallas:
    def __init__(self, image_size, patch_size, kernel_size, batch_size,
                 in_chans, embed_dim, stride, padding, key):
        self.kernel_size = int(kernel_size)
        self.stride = int(stride)
        self.padding = int(padding)
        self.in_chans = int(in_chans)
        self.embed_dim = int(embed_dim)
        k1, k2 = jax.random.split(key, 2)
        fan_in = in_chans * kernel_size * kernel_size
        bound = 1.0 / math.sqrt(fan_in)
        # Conv2d params (OIHW, like PyTorch); BatchNorm2d default init.
        self.conv_w = jax.random.uniform(
            k1, (embed_dim, in_chans, kernel_size, kernel_size),
            jnp.float32, -bound, bound)
        self.conv_b = jax.random.uniform(k2, (embed_dim,), jnp.float32, -bound, bound)
        self.bn_gamma = jnp.ones((embed_dim,), jnp.float32)
        self.bn_beta = jnp.zeros((embed_dim,), jnp.float32)
        self.bn_eps = 1e-5
        # TODO(synk): BatchNorm2d running_mean/var momentum updates are a training side
        # effect with no influence on this forward output; not modeled.

    def __call__(self, x_nchw):
        N, Cin, H, W = x_nchw.shape
        kh = kw = self.kernel_size
        s, p, C = self.stride, self.padding, self.embed_dim

        # ---- im2col with replicate ('edge') padding, built directly in bf16 (XLA) ----
        # TODO(synk): a tap-wise grid-reduction conv reading the padded NHWC input
        # directly would remove this materialisation entirely.
        x = jnp.transpose(x_nchw, (0, 2, 3, 1)).astype(jnp.bfloat16)   # NHWC bf16
        x = jnp.pad(x, ((0, 0), (p, p), (p, p), (0, 0)), mode='edge')
        Ho = (H + 2 * p - kh) // s + 1
        Wo = (W + 2 * p - kw) // s + 1
        taps = []
        for dy in range(kh):
            for dx in range(kw):
                taps.append(x[:, dy:dy + s * (Ho - 1) + 1:s,
                              dx:dx + s * (Wo - 1) + 1:s, :])
        # K ordered (Cin, dy, dx) to match PyTorch OIHW weight flattening.
        patches = jnp.stack(taps, axis=-1).reshape(N * Ho * Wo, Cin * kh * kw)

        M = N * Ho * Wo
        K = Cin * kh * kw
        K_pad = _round_up(K, 8)                      # sublane-align contraction dim
        # big row tiles (amortise ~0.35us/step overhead), but >=2 blocks so the
        # "parallel" grid axis can split across both v7x TensorCores.
        nblk_target = max(2, 2 * math.ceil(M / (2 * _ROW_TILE_CAP)))
        tm = min(_round_up(math.ceil(M / nblk_target), 8), _round_up(M, 8))
        M_pad = _round_up(M, tm)

        patches = jnp.pad(patches, ((0, M_pad - M), (0, K_pad - K)))
        w_mat = jnp.pad(self.conv_w.reshape(C, K).T,
                        ((0, K_pad - K), (0, 0))).astype(jnp.bfloat16)

        # ---- conv (no bias: train-mode BN removes any per-channel constant exactly)
        #      + per-block batch statistics (Pallas, parallel grid) ----
        conv_flat, psum, pssq = conv_and_stats(patches, w_mat, tm=tm)

        nblk = M_pad // tm
        sum_c = jnp.sum(psum.reshape(nblk, 8, C)[:, 0, :], axis=0)
        ssq_c = jnp.sum(pssq.reshape(nblk, 8, C)[:, 0, :], axis=0)
        mean = sum_c / M                                   # mean of the bias-free conv
        var = jnp.maximum(ssq_c / M - mean * mean, 0.0)    # biased batch variance
        inv_std = 1.0 / jnp.sqrt(var + self.bn_eps)
        scale = (self.bn_gamma * inv_std).reshape(1, C)
        shift = (self.bn_beta - mean * self.bn_gamma * inv_std).reshape(1, C)

        # ---- polyphase (stride-s) layout of the -inf padded conv map (bf16): every
        #      3x3 pool tap becomes a contiguous slice inside the fused pool kernel ----
        conv_nhwc = conv_flat[:M].reshape(N, Ho, Wo, C)
        Hp, Wp = Ho + 2, Wo + 2
        Po = (Hp - 3) // s + 1
        Pw = (Wp - 3) // s + 1
        ext = 2 // s                         # max in-phase tap offset (dy // s)
        Hq, Wq = Po + ext, Pw + ext
        tH, tW = s * Hq, s * Wq
        xp = jnp.pad(conv_nhwc, ((0, 0), (1, 1), (1, 1), (0, 0)),
                     constant_values=-jnp.inf)
        xp = xp[:, :min(Hp, tH), :min(Wp, tW), :]
        xp = jnp.pad(xp, ((0, 0), (0, tH - xp.shape[1]),
                          (0, tW - xp.shape[2]), (0, 0)),
                     constant_values=-jnp.inf)
        ph = xp.reshape(N, Hq, s, Wq, s, C).transpose(0, 2, 4, 1, 3, 5)
        ph4 = ph.reshape(N * s * s, Hq, Wq, C)

        # channel tiling: full C unless it splits cleanly into 128-lane blocks
        tc = 128 if (C % 128 == 0) else C
        # TODO(synk): for very large feature maps the per-batch polyphase block should
        # also be row-tiled; at stem-sized maps it fits VMEM comfortably.  Lane folding
        # for C < 128 (masked vst on the small output) is likewise left out.

        # ---- fused BN-apply + exact GELU (2 erf) + max over the 9 taps (Pallas) ----
        pooled = bn_gelu_maxpool(ph4, scale, shift, s=s, po=Po, pw=Pw, tc=tc, n=N)
        return jnp.transpose(pooled, (0, 3, 1, 2))         # NCHW


# ---------------------------------------------------------------------------
# Pure-JAX reference (same semantics, includes the conv bias) for a sanity check.
# ---------------------------------------------------------------------------
def reference(x_nchw, m):
    p, s = m.padding, m.stride
    xp = jnp.pad(x_nchw, ((0, 0), (0, 0), (p, p), (p, p)), mode='edge')
    conv = lax.conv_general_dilated(
        xp, m.conv_w, window_strides=(s, s), padding='VALID',
        dimension_numbers=('NCHW', 'OIHW', 'NCHW'))
    conv = conv + m.conv_b[None, :, None, None]
    mean = jnp.mean(conv, axis=(0, 2, 3), keepdims=True)
    var = jnp.mean((conv - mean) ** 2, axis=(0, 2, 3), keepdims=True)
    y = (conv - mean) / jnp.sqrt(var + m.bn_eps)
    y = y * m.bn_gamma[None, :, None, None] + m.bn_beta[None, :, None, None]
    g = 0.5 * y * (1.0 + jax.lax.erf(y / math.sqrt(2.0)))
    gp = jnp.pad(g, ((0, 0), (0, 0), (1, 1), (1, 1)), constant_values=-jnp.inf)
    return lax.reduce_window(gp, -jnp.inf, lax.max,
                             window_dimensions=(1, 1, 3, 3),
                             window_strides=(1, 1, s, s), padding='VALID')


if __name__ == "__main__":
    key = jax.random.PRNGKey(0)
    kparam, kx = jax.random.split(key)

    N, Cin, H, W = 2, 4, 16, 16
    embed_dim, ksize, stride, pad = 32, 3, 2, 1

    module = ConvEmbedPallas(image_size=H, patch_size=2, kernel_size=ksize,
                             batch_size=N, in_chans=Cin, embed_dim=embed_dim,
                             stride=stride, padding=pad, key=kparam)
    x = jax.random.normal(kx, (N, Cin, H, W), dtype=jnp.float32)

    out = module(x)
    out = jax.block_until_ready(out)

    ref = jax.block_until_ready(reference(x, module))
    assert out.shape == ref.shape == (N, embed_dim, 4, 4), (out.shape, ref.shape)
    np.testing.assert_allclose(np.asarray(out), np.asarray(ref),
                               rtol=3e-2, atol=3e-2)
    print("KERNEL_OK")
</pallas_src>

<mosaic_0001>
module attributes {stable_mosaic.version = 11 : i64} {
  func.func @_conv_stats_kernel(%arg0: i32, %arg1: memref<64x40xbf16, #tpu.memory_space<vmem>>, %arg2: memref<40x32xbf16, #tpu.memory_space<vmem>>, %arg3: memref<64x32xbf16, #tpu.memory_space<vmem>>, %arg4: memref<8x32xf32, #tpu.memory_space<vmem>>, %arg5: memref<8x32xf32, #tpu.memory_space<vmem>>) attributes {dimension_semantics = [#tpu.dimension_semantics<parallel>], iteration_bounds = array<i64: 2>, scalar_prefetch = 0 : i64, scratch_operands = 0 : i64, tpu.core_type = #tpu.core_type<tc>, window_params = [{transform_indices = @transform_0, window_bounds = array<i64: 64, 40>}, {pipeline_mode = #tpu.pipeline_mode<synchronous>, transform_indices = @transform_1, window_bounds = array<i64: 40, 32>}, {transform_indices = @transform_2, window_bounds = array<i64: 64, 32>}, {transform_indices = @transform_3, window_bounds = array<i64: 8, 32>}, {transform_indices = @transform_4, window_bounds = array<i64: 8, 32>}]} {
    %c0 = arith.constant 0 : index
    %c0_0 = arith.constant 0 : index
    %0 = vector.load %arg1[%c0, %c0_0] : memref<64x40xbf16, #tpu.memory_space<vmem>>, vector<64x40xbf16>
    %c0_1 = arith.constant 0 : index
    %c0_2 = arith.constant 0 : index
    %1 = vector.load %arg2[%c0_1, %c0_2] : memref<40x32xbf16, #tpu.memory_space<vmem>>, vector<40x32xbf16>
    %cst = arith.constant dense<0.000000e+00> : vector<64x32xf32>
    %2 = tpu.matmul %0, %1, %cst {dimension_numbers = #tpu.dot_dimension_numbers<[1], [0], [0], [1], [0, 0, 1, 1], [], []>} : vector<64x40xbf16>, vector<40x32xbf16>, vector<64x32xf32> -> vector<64x32xf32>
    %3 = arith.truncf %2 : vector<64x32xf32> to vector<64x32xbf16>
    %c0_3 = arith.constant 0 : index
    %c0_4 = arith.constant 0 : index
    %4 = vector.load %arg3[%c0_3, %c0_4] : memref<64x32xbf16, #tpu.memory_space<vmem>>, vector<64x32xbf16>
    tpu.vector_store %arg3[%c0_3, %c0_4], %3 {strides = array<i32>} : memref<64x32xbf16, #tpu.memory_space<vmem>>, vector<64x32xbf16>,
    %cst_5 = arith.constant dense<0.000000e+00> : vector<32xf32>
    %5 = vector.multi_reduction <add>, %2, %cst_5 [0] : vector<64x32xf32> to vector<32xf32>
    %6 = vector.shape_cast %5 : vector<32xf32> to vector<1x32xf32>
    %7 = vector.shape_cast %6 : vector<1x32xf32> to vector<1x32xf32>
    %8 = vector.broadcast %7 : vector<1x32xf32> to vector<8x32xf32>
    %c0_6 = arith.constant 0 : index
    %c0_7 = arith.constant 0 : index
    %9 = vector.load %arg4[%c0_6, %c0_7] : memref<8x32xf32, #tpu.memory_space<vmem>>, vector<8x32xf32>
    tpu.vector_store %arg4[%c0_6, %c0_7], %8 {strides = array<i32>} : memref<8x32xf32, #tpu.memory_space<vmem>>, vector<8x32xf32>,
    %10 = arith.mulf %2, %2 : vector<64x32xf32>
    %cst_8 = arith.constant dense<0.000000e+00> : vector<32xf32>
    %11 = vector.multi_reduction <add>, %10, %cst_8 [0] : vector<64x32xf32> to vector<32xf32>
    %12 = vector.shape_cast %11 : vector<32xf32> to vector<1x32xf32>
    %13 = vector.shape_cast %12 : vector<1x32xf32> to vector<1x32xf32>
    %14 = vector.broadcast %13 : vector<1x32xf32> to vector<8x32xf32>
    %c0_9 = arith.constant 0 : index
    %c0_10 = arith.constant 0 : index
    %15 = vector.load %arg5[%c0_9, %c0_10] : memref<8x32xf32, #tpu.memory_space<vmem>>, vector<8x32xf32>
    tpu.vector_store %arg5[%c0_9, %c0_10], %14 {strides = array<i32>} : memref<8x32xf32, #tpu.memory_space<vmem>>, vector<8x32xf32>,
    return
  }
  func.func @transform_0(%arg0: i32) -> (i32, i32) {
    %c0_i32 = arith.constant 0 : i32
    %c0_i32_0 = arith.constant 0 : i32
    return %arg0, %c0_i32 : i32, i32
  }
  func.func @transform_1(%arg0: i32) -> (i32, i32) {
    %c0_i32 = arith.constant 0 : i32
    %c0_i32_0 = arith.constant 0 : i32
    %c0_i32_1 = arith.constant 0 : i32
    return %c0_i32, %c0_i32_0 : i32, i32
  }
  func.func @transform_2(%arg0: i32) -> (i32, i32) {
    %c0_i32 = arith.constant 0 : i32
    %c0_i32_0 = arith.constant 0 : i32
    return %arg0, %c0_i32 : i32, i32
  }
  func.func @transform_3(%arg0: i32) -> (i32, i32) {
    %c0_i32 = arith.constant 0 : i32
    %c0_i32_0 = arith.constant 0 : i32
    return %arg0, %c0_i32 : i32, i32
  }
  func.func @transform_4(%arg0: i32) -> (i32, i32) {
    %c0_i32 = arith.constant 0 : i32
    %c0_i32_0 = arith.constant 0 : i32
    return %arg0, %c0_i32 : i32, i32
  }
}

</mosaic_0001>

<llo_original>
// kernel: tpu_custom_call.1
$region0: #{tpu_custom_call.1}
  #allocation0 [shape = 'u32[]', space=smem, size = 0x4, offset = 0x4, fixed_abs, tag = 'smem constant byte address 0x4 - core index']
  #allocation1 [shape = 'u32[72,128]{1,0:T(1,128)}', space=vmem, size = 0x9000, scoped, tag = 'internal scratch']
  %s0 = inlined_call_operand.vmem [shape: bf16[128,40], index: 0, kind: input, shape index: {}]
  %s1 = inlined_call_operand.vmem [shape: bf16[40,32], index: 1, kind: input, shape index: {}]
  %s2 = inlined_call_operand.vmem [shape: bf16[128,32], index: 2, kind: output, shape index: {0}]
  %s3 = inlined_call_operand.hbm [shape: f32[16,32], index: 3, kind: output, shape index: {1}]
  %s4 = inlined_call_operand.hbm [shape: f32[16,32], index: 4, kind: output, shape index: {2}]
  %5 = xla_tuple %s2, %s3, %s4
  %s6 = sld [smem:[#allocation0]]
  $region57: #{tpu_custom_call.1} parent=0
    _
  %s8 = ssub.s32 1, %s6
  %s9 = scalar_select 0, %s8, %s6
  $region1: #{tpu_custom_call.1} parent=0
    #allocation2 [shape = 'u8[8192]{0}', space=vmem, size = 0x2000, scoped, tag = 'output window, operand 1']
    #allocation3 [shape = 's32[2]{0}', space=sflag, size = 0x8, scoped, tag = 'scoped memory for tpu_custom_call.1']
    #allocation4 [shape = 'u8[8192]{0}', space=vmem, size = 0x2000, scoped, tag = 'output window, operand 2']
    #allocation5 [shape = 's32[2]{0}', space=sflag, size = 0x8, scoped, tag = 'scoped memory for tpu_custom_call.1']
    %10 = vsyncpa [#allocation3], 0
    %s11 = scalar_lea.sflag [#allocation3], 1
    %12 = vsyncpa %s11, 0
    %13 = vsyncpa [#allocation5], 0
    %s14 = scalar_lea.sflag [#allocation5], 1
    %15 = vsyncpa %s14, 0
    loop: start=0, step=1, limit=4
    $region2: #{tpu_custom_call.1} parent=1 // loop_pre_header
      _
    $region3: #{tpu_custom_call.1} parent=1 // loop_header
      %s17 = sphi 0, %s21
      %p18 = scmp.ge.s32.totalorder %s17, 4
      %s27 = sphi 0, %s29
      %s30 = sphi 0, %s27
      %s31 = sphi 0, %s30
      %s47 = sphi 0, %s31
      %s51 = sphi 0, %s51
      %s53 = sphi 0, %s51
      %s54 = sphi 0, %s53
      %s68 = sphi 0, %s54
      %s74 = sphi 0, %s76
      %s77 = sphi 0, %s74
      %s78 = sphi 0, %s77
      %s94 = sphi 0, %s78
      %s100 = sphi 0, %s102
      %s103 = sphi 0, %s100
      %s104 = sphi 0, %s103
      %s120 = sphi 0, %s104
      %s126 = sphi 0, %s128
      %s129 = sphi 0, %s126
      %s130 = sphi 0, %s129
      %s146 = sphi 0, %s130
    $region4: #{tpu_custom_call.1} parent=1 // loop_header_branch
      %20 = sbr.rel (%p18) target = $region8
    $region5: #{tpu_custom_call.1} parent=1 // loop_body
      %s22 = ssub.s32 %s17, 1
      %s23 = ssub.s32 %s17, 2
      %s24 = sadd.s32 %s17, 1
      %s25 = ssub.s32 %s17, %s24
      %p26 = scmp.eq.s32.totalorder %s25, 0
      %s28 = sadd.s32 %s27, 1
      %s29 = scalar_select %p26, %s27, %s28
      %p32 = pneg %p26
      %p33 = scmp.eq.s32.totalorder %s17, 1
      %p34 = por %p32, %p33
      %p35 = scmp.ne.s32.totalorder %s27, %s30
      %p36 = scmp.eq.s32.totalorder %s17, 0
      %p37 = por %p35, %p36
      %p38 = scmp.ne.s32.totalorder %s27, %s30
      %p39 = scmp.eq.s32.totalorder %s22, 1
      %p40 = por %p38, %p39
      %p41 = scmp.ne.s32.totalorder %s30, %s31
      %p42 = scmp.eq.s32.totalorder %s22, 0
      %p43 = por %p41, %p42
      %p44 = scmp.ne.s32.totalorder %s30, %s31
      %p45 = scmp.eq.s32.totalorder %s23, 1
      %p46 = por %p44, %p45
      %p48 = scmp.ne.s32.totalorder %s31, %s47
      %p49 = scmp.eq.s32.totalorder %s23, 0
      %p50 = por %p48, %p49
      %s52 = sadd.s32 %s51, 1
      %p55 = scmp.eq.s32.totalorder %s17, 1
      %p56 = scmp.ne.s32.totalorder %s51, %s53
      %p57 = scmp.eq.s32.totalorder %s17, 0
      %p58 = por %p56, %p57
      %p59 = scmp.ne.s32.totalorder %s51, %s53
      %p60 = scmp.eq.s32.totalorder %s22, 1
      %p61 = por %p59, %p60
      %p62 = scmp.ne.s32.totalorder %s53, %s54
      %p63 = scmp.eq.s32.totalorder %s22, 0
      %p64 = por %p62, %p63
      %p65 = scmp.ne.s32.totalorder %s53, %s54
      %p66 = scmp.eq.s32.totalorder %s23, 1
      %p67 = por %p65, %p66
      %p69 = scmp.ne.s32.totalorder %s54, %s68
      %p70 = scmp.eq.s32.totalorder %s23, 0
      %p71 = por %p69, %p70
      %s72 = ssub.s32 %s17, %s24
      %p73 = scmp.eq.s32.totalorder %s72, 0
      %s75 = sadd.s32 %s74, 1
      %s76 = scalar_select %p73, %s74, %s75
      %p79 = pneg %p73
      %p80 = scmp.eq.s32.totalorder %s17, 1
      %p81 = por %p79, %p80
      %p82 = scmp.ne.s32.totalorder %s74, %s77
      %p83 = scmp.eq.s32.totalorder %s17, 0
      %p84 = por %p82, %p83
      %p85 = scmp.ne.s32.totalorder %s74, %s77
      %p86 = scmp.eq.s32.totalorder %s22, 1
      %p87 = por %p85, %p86
      %p88 = scmp.ne.s32.totalorder %s77, %s78
      %p89 = scmp.eq.s32.totalorder %s22, 0
      %p90 = por %p88, %p89
      %p91 = scmp.ne.s32.totalorder %s77, %s78
      %p92 = scmp.eq.s32.totalorder %s23, 1
      %p93 = por %p91, %p92
      %p95 = scmp.ne.s32.totalorder %s78, %s94
      %p96 = scmp.eq.s32.totalorder %s23, 0
      %p97 = por %p95, %p96
      %s98 = ssub.s32 %s17, %s24
      %p99 = scmp.eq.s32.totalorder %s98, 0
      %s101 = sadd.s32 %s100, 1
      %s102 = scalar_select %p99, %s100, %s101
      %p105 = pneg %p99
      %p106 = scmp.eq.s32.totalorder %s17, 1
      %p107 = por %p105, %p106
      %p108 = scmp.ne.s32.totalorder %s100, %s103
      %p109 = scmp.eq.s32.totalorder %s17, 0
      %p110 = por %p108, %p109
      %p111 = scmp.ne.s32.totalorder %s100, %s103
      %p112 = scmp.eq.s32.totalorder %s22, 1
      %p113 = por %p111, %p112
      %p114 = scmp.ne.s32.totalorder %s103, %s104
      %p115 = scmp.eq.s32.totalorder %s22, 0
      %p116 = por %p114, %p115
      %p117 = scmp.ne.s32.totalorder %s103, %s104
      %p118 = scmp.eq.s32.totalorder %s23, 1
      %p119 = por %p117, %p118
      %p121 = scmp.ne.s32.totalorder %s104, %s120
      %p122 = scmp.eq.s32.totalorder %s23, 0
      %p123 = por %p121, %p122
      %s124 = ssub.s32 %s17, %s24
      %p125 = scmp.eq.s32.totalorder %s124, 0
      %s127 = sadd.s32 %s126, 1
      %s128 = scalar_select %p125, %s126, %s127
      %p131 = pneg %p125
      %p132 = scmp.eq.s32.totalorder %s17, 1
      %p133 = por %p131, %p132
      %p134 = scmp.ne.s32.totalorder %s126, %s129
      %p135 = scmp.eq.s32.totalorder %s17, 0
      %p136 = por %p134, %p135
      %p137 = scmp.ne.s32.totalorder %s126, %s129
      %p138 = scmp.eq.s32.totalorder %s22, 1
      %p139 = por %p137, %p138
      %p140 = scmp.ne.s32.totalorder %s129, %s130
      %p141 = scmp.eq.s32.totalorder %s22, 0
      %p142 = por %p140, %p141
      %p143 = scmp.ne.s32.totalorder %s129, %s130
      %p144 = scmp.eq.s32.totalorder %s23, 1
      %p145 = por %p143, %p144
      %p147 = scmp.ne.s32.totalorder %s130, %s146
      %p148 = scmp.eq.s32.totalorder %s23, 0
      %p149 = por %p147, %p148
      %p150 = scmp.le.s32.totalorder 1, %s17
      %p151 = scmp.lt.s32.totalorder %s17, 3
      %p152 = pnand %p150, %p151
      %p153 = pneg %p152
      // Predicated region
      $region9: #{tpu_custom_call.1} parent=5 // pred_check
        _
      $region10: #{tpu_custom_call.1} parent=5 // pred_check_branch
        %155 = sbr.rel (%p152) target = $region12
      $region11: #{tpu_custom_call.1} parent=5 // pred_region
        %s156 = ssub.s32 %s17, 1
        // Predicated region
        $region13: #{tpu_custom_call.1} parent=11 // pred_check
          %p157 = pneg %p64
        $region14: #{tpu_custom_call.1} parent=11 // pred_check_branch
          %159 = sbr.rel (%p157) target = $region16
        $region15: #{tpu_custom_call.1} parent=11 // pred_region
          _
        $region16: #{tpu_custom_call.1} parent=11 // pred_fallthru
          _
      $region12: #{tpu_custom_call.1} parent=5 // pred_fallthru
        _
      %p160 = scmp.lt.s32.totalorder %s17, 2
      // Predicated region
      $region17: #{tpu_custom_call.1} parent=5 // pred_check
        %p161 = pneg %p160
      $region18: #{tpu_custom_call.1} parent=5 // pred_check_branch
        %163 = sbr.rel (%p161) target = $region20
      $region19: #{tpu_custom_call.1} parent=5 // pred_region
        // Predicated region
        $region21: #{tpu_custom_call.1} parent=19 // pred_check
          %p164 = pneg %p37
        $region22: #{tpu_custom_call.1} parent=19 // pred_check_branch
          %166 = sbr.rel (%p164) target = $region24
        $region23: #{tpu_custom_call.1} parent=19 // pred_region
          %s167 = smul.u32 8, %s17
          %p168 = scmp.lt.s32.totalorder %s167, 15
          %s169 = scalar_select %p168, %s167, 15
          %s170 = smul.addr %s169, 4
          %s171 = scalar_lea.vmem %s0, %s170
          %s172 = smul.u32 8, %s17
        $region24: #{tpu_custom_call.1} parent=19 // pred_fallthru
          _
      $region20: #{tpu_custom_call.1} parent=5 // pred_fallthru
        _
      %p173 = scmp.le.s32.totalorder 1, %s17
      %p174 = scmp.lt.s32.totalorder %s17, 3
      %p175 = pnand %p173, %p174
      %p176 = pneg %p175
      // Predicated region
      $region25: #{tpu_custom_call.1} parent=5 // pred_check
        _
      $region26: #{tpu_custom_call.1} parent=5 // pred_check_branch
        %178 = sbr.rel (%p175) target = $region28
      $region27: #{tpu_custom_call.1} parent=5 // pred_region
        %s179 = ssub.s32 %s17, 1
        %s180 = smul.u32 8, %s22
        %p181 = scmp.lt.s32.totalorder %s180, 15
        %s182 = scalar_select %p181, %s180, 15
        %s183 = smul.addr %s182, 4
        %s184 = scalar_lea.vmem %s0, %s183
        %p185 = pneg %p43
        %p186 = pneg %p40
        %p187 = pneg %p64
        %p188 = pneg %p61
        %p189 = pneg %p90
        %p190 = pneg %p87
        %s191 = smul.u32 8, %s22
        %p192 = scmp.lt.s32.totalorder %s191, 15
        %s193 = scalar_select %p192, %s191, 15
        %s194 = smul.addr %s193, 4
        %s195 = scalar_lea.vmem %s2, %s194
        %p196 = pneg %p116
        %p197 = pneg %p113
        %s198 = sand.u32 %s103, 1
        %s199 = scalar_lea.sflag [#allocation3], %s198
        %s200 = sand.u32 %s103, 1
        %s201 = smul.addr %s200, 8
        %s202 = scalar_lea.vmem [#allocation2], %s201
        %p203 = pneg %p142
        %p204 = pneg %p139
        %s205 = sand.u32 %s129, 1
        %s206 = scalar_lea.sflag [#allocation5], %s205
        %s207 = sand.u32 %s129, 1
        %s208 = smul.addr %s207, 8
        %s209 = scalar_lea.vmem [#allocation4], %s208
        %s210 = smul.u32 8, %s22
        %p211 = scmp.lt.s32.totalorder %s210, 15
        %s212 = scalar_select %p211, %s210, 15
        %s213 = smul.addr %s212, 4
        %s214 = scalar_lea.vmem %s0, %s213
        %s215 = smul.u32 8, %s22
        %s216 = smul.u32 8, %s22
        %p217 = scmp.lt.s32.totalorder %s216, 15
        %s218 = scalar_select %p217, %s216, 15
        %s219 = smul.addr %s218, 4
        %s220 = scalar_lea.vmem %s2, %s219
        %s221 = smul.u32 8, %s22
        %v223 = vld [vmem:[%s214] sm:$0xf]
        %v224 = vld [vmem:[%s214 + $0x4] sm:$0xf]
        %v225 = vld [vmem:[%s214 + $0x8] sm:$0xf]
        %v226 = vld [vmem:[%s214 + $0xc] sm:$0xf]
        %v227 = vld [vmem:[%s214 + $0x10] sm:$0xf]
        %v228 = vld [vmem:[%s214 + $0x14] sm:$0xf]
        %v229 = vld [vmem:[%s214 + $0x18] sm:$0xf]
        %v230 = vld [vmem:[%s214 + $0x1c] sm:$0xf]
        %v231 = vld [vmem:[%s1] sm:$0xf]
        %v232 = vld [vmem:[%s1 + $0x4] sm:$0xf]
        %v233 = vld [vmem:[%s1 + $0x8] sm:$0xf]
        %v234 = vld [vmem:[%s1 + $0xc] sm:$0xf]
        %v235 = vld [vmem:[%s1 + $0x10] sm:$0xf]
        %v244 = vunpack.c.l.b16 %v223
        %v245 = vunpack.c.l.b16 %v224
        %v246 = vunpack.c.l.b16 %v225
        %v247 = vunpack.c.l.b16 %v226
        %v248 = vunpack.c.l.b16 %v227
        %v249 = vunpack.c.l.b16 %v228
        %v250 = vunpack.c.l.b16 %v229
        %v251 = vunpack.c.l.b16 %v230
        %v252 = vpack.c.b16 %v245, %v244
        %v253 = vpack.c.b16 %v247, %v246
        %v254 = vpack.c.b16 %v249, %v248
        %v255 = vpack.c.b16 %v251, %v250
        %v261 = vunpack.c.l.b16 %v231
        %v262 = vunpack.c.l.b16 %v232
        %v263 = vunpack.c.l.b16 %v233
        %v264 = vunpack.c.l.b16 %v234
        %v265 = vunpack.c.l.b16 %v235
        %v266 = vpack.c.b16 %v262, %v261
        %v267 = vpack.c.b16 %v264, %v263
        %v268 = vpack.c.b16 %v265, %v265
        %vm271 = vcmask 326656
        %v273 = vsel %vm271, %v252, 0
        %v276 = vsel %vm271, %v253, 0
        %v279 = vsel %vm271, %v254, 0
        %v282 = vsel %vm271, %v255, 0
        %vm284 = vcmask 1043456
        %v286 = vsel %vm284, %v268, 0
        %288 = vmatpush.bf16.msra.mxu0 0
        %289 = vmatpush.bf16.msra.mxu0 0
        %290 = vmatpush.bf16.msra.mxu0 0
        %291 = vmatpush.bf16.msra.mxu0 0
        %292 = vmatpush.bf16.msra.mxu0 0
        %293 = vmatpush.bf16.msra.mxu0 %v286
        %294 = vmatpush.bf16.msra.mxu0 %v267
        %295 = vmatpush.bf16.msra.mxu0 %v266
        %296 = vmatmul.bf16.gmra.mxu0 %v273
        %v297 = vpop.f32.mrf.mxu0
        %v298 = vadd.f32 0.0, %v297
        %v299 = vpop.f32.mrf.mxu0
        %v300 = vadd.f32 0.0, %v299
        %301 = vmatmul.bf16.gmra.mxu0 %v276
        %v302 = vpop.f32.mrf.mxu0
        %v303 = vadd.f32 0.0, %v302
        %v304 = vpop.f32.mrf.mxu0
        %v305 = vadd.f32 0.0, %v304
        %306 = vmatmul.bf16.gmra.mxu0 %v279
        %v307 = vpop.f32.mrf.mxu0
        %v308 = vadd.f32 0.0, %v307
        %v309 = vpop.f32.mrf.mxu0
        %v310 = vadd.f32 0.0, %v309
        %311 = vmatmul.bf16.gmra.mxu0 %v282
        %v312 = vpop.f32.mrf.mxu0
        %v313 = vadd.f32 0.0, %v312
        %v314 = vpop.f32.mrf.mxu0
        %v315 = vadd.f32 0.0, %v314
        %316 = vdwg.mxu0
        %v317 = vpack.c.bf16 %v298, %v298
        %v318 = vpack.c.bf16 %v300, %v300
        %v319 = vpack.c.bf16 %v303, %v303
        %v320 = vpack.c.bf16 %v305, %v305
        %v321 = vpack.c.bf16 %v308, %v308
        %v322 = vpack.c.bf16 %v310, %v310
        %v323 = vpack.c.bf16 %v313, %v313
        %v324 = vpack.c.bf16 %v315, %v315
        %vm325 = vcmask 257024
        %326 = vst.msk [vmem:[%s220] sm:$0xf] %vm325, %v317
        %327 = vst.msk [vmem:[%s220 + $0x4] sm:$0xf] %vm325, %v318
        %328 = vst.msk [vmem:[%s220 + $0x8] sm:$0xf] %vm325, %v319
        %329 = vst.msk [vmem:[%s220 + $0xc] sm:$0xf] %vm325, %v320
        %330 = vst.msk [vmem:[%s220 + $0x10] sm:$0xf] %vm325, %v321
        %331 = vst.msk [vmem:[%s220 + $0x14] sm:$0xf] %vm325, %v322
        %332 = vst.msk [vmem:[%s220 + $0x18] sm:$0xf] %vm325, %v323
        %333 = vst.msk [vmem:[%s220 + $0x1c] sm:$0xf] %vm325, %v324
        %vm334 = vcmask 261120
        %v335 = vsel %vm334, %v298, 0.0
        %v336 = vsel %vm334, %v300, 0.0
        %v337 = vadd.f32 %v335, %v336
        %v338 = vsel %vm334, %v303, 0.0
        %v339 = vadd.f32 %v337, %v338
        %v340 = vsel %vm334, %v305, 0.0
        %v341 = vadd.f32 %v339, %v340
        %v342 = vsel %vm334, %v308, 0.0
        %v343 = vadd.f32 %v341, %v342
        %v344 = vsel %vm334, %v310, 0.0
        %v345 = vadd.f32 %v343, %v344
        %v346 = vsel %vm334, %v313, 0.0
        %v347 = vadd.f32 %v345, %v346
        %v348 = vsel %vm334, %v315, 0.0
        %v349 = vadd.f32 %v347, %v348
        %v350 = vrot.slane %v349, 4
        %v351 = vadd.f32 %v349, %v350
        %v352 = vrot.slane %v351, 2
        %v353 = vadd.f32 %v351, %v352
        %v354 = vrot.slane %v353, 1
        %v355 = vadd.f32 %v353, %v354
        %356 = vst.msk [vmem:[%s202] sm:$0xff] %vm334, %v355
        %v357 = vmul.f32 %v298, %v298
        %v358 = vmul.f32 %v300, %v300
        %v359 = vmul.f32 %v303, %v303
        %v360 = vmul.f32 %v305, %v305
        %v361 = vmul.f32 %v308, %v308
        %v362 = vmul.f32 %v310, %v310
        %v363 = vmul.f32 %v313, %v313
        %v364 = vmul.f32 %v315, %v315
        %v365 = vsel %vm334, %v357, 0.0
        %v366 = vsel %vm334, %v358, 0.0
        %v367 = vadd.f32 %v365, %v366
        %v368 = vsel %vm334, %v359, 0.0
        %v369 = vadd.f32 %v367, %v368
        %v370 = vsel %vm334, %v360, 0.0
        %v371 = vadd.f32 %v369, %v370
        %v372 = vsel %vm334, %v361, 0.0
        %v373 = vadd.f32 %v371, %v372
        %v374 = vsel %vm334, %v362, 0.0
        %v375 = vadd.f32 %v373, %v374
        %v376 = vsel %vm334, %v363, 0.0
        %v377 = vadd.f32 %v375, %v376
        %v378 = vsel %vm334, %v364, 0.0
        %v379 = vadd.f32 %v377, %v378
        %v380 = vrot.slane %v379, 4
        %v381 = vadd.f32 %v379, %v380
        %v382 = vrot.slane %v381, 2
        %v383 = vadd.f32 %v381, %v382
        %v384 = vrot.slane %v383, 1
        %v385 = vadd.f32 %v383, %v384
        %386 = vst.msk [vmem:[%s209] sm:$0xff] %vm334, %v385
        %s387 = smul.u32 8, %s22
        %p388 = scmp.lt.s32.totalorder %s387, 15
        %s389 = scalar_select %p388, %s387, 15
        %s390 = smul.addr %s389, 4
        %s391 = scalar_lea.vmem %s2, %s390
        %s392 = sand.u32 %s103, 1
        %s393 = scalar_lea.sflag [#allocation3], %s392
        %s394 = sand.u32 %s103, 1
        %s395 = smul.addr %s394, 8
        %s396 = scalar_lea.vmem [#allocation2], %s395
        %s397 = sand.u32 %s129, 1
        %s398 = scalar_lea.sflag [#allocation5], %s397
        %s399 = sand.u32 %s129, 1
        %s400 = smul.addr %s399, 8
        %s401 = scalar_lea.vmem [#allocation4], %s400
        // Predicated region
        $region29: #{tpu_custom_call.1} parent=27 // pred_check
          %p402 = pneg %p87
        $region30: #{tpu_custom_call.1} parent=27 // pred_check_branch
          %404 = sbr.rel (%p402) target = $region32
        $region31: #{tpu_custom_call.1} parent=27 // pred_region
          %s405 = smul.u32 8, %s22
        $region32: #{tpu_custom_call.1} parent=27 // pred_fallthru
          _
        // Predicated region
        $region33: #{tpu_custom_call.1} parent=27 // pred_check
          %p406 = pneg %p113
        $region34: #{tpu_custom_call.1} parent=27 // pred_check_branch
          %408 = sbr.rel (%p406) target = $region36
        $region35: #{tpu_custom_call.1} parent=27 // pred_region
          %410 = vsyncadd %s393, 0
          %s411 = smul.addr %s22, 8
          %s412 = scalar_lea.hbm %s3, %s411
          %s414 = sshll.u32 %s396, 4
          %s415 = int_to_ptr.vmem [resolvable:$true] %s414
          %s416 = sshll.u32 %s412, 4
          %s417 = int_to_ptr.hbm [resolvable:$true] %s416
          %419 = dma.vmem_to_hbm [thread:$0]  %s415, 128, %s417, %s393
        $region36: #{tpu_custom_call.1} parent=27 // pred_fallthru
          _
        // Predicated region
        $region37: #{tpu_custom_call.1} parent=27 // pred_check
          %p420 = pneg %p139
        $region38: #{tpu_custom_call.1} parent=27 // pred_check_branch
          %422 = sbr.rel (%p420) target = $region40
        $region39: #{tpu_custom_call.1} parent=27 // pred_region
          %424 = vsyncadd %s398, 0
          %s425 = smul.addr %s22, 8
          %s426 = scalar_lea.hbm %s4, %s425
          %s428 = sshll.u32 %s401, 4
          %s429 = int_to_ptr.vmem [resolvable:$true] %s428
          %s430 = sshll.u32 %s426, 4
          %s431 = int_to_ptr.hbm [resolvable:$true] %s430
          %433 = dma.vmem_to_hbm [thread:$0]  %s429, 128, %s431, %s398
        $region40: #{tpu_custom_call.1} parent=27 // pred_fallthru
          _
      $region28: #{tpu_custom_call.1} parent=5 // pred_fallthru
        _
      %p434 = scmp.le.s32.totalorder 2, %s17
      // Predicated region
      $region41: #{tpu_custom_call.1} parent=5 // pred_check
        %p435 = pneg %p434
      $region42: #{tpu_custom_call.1} parent=5 // pred_check_branch
        %437 = sbr.rel (%p435) target = $region44
      $region43: #{tpu_custom_call.1} parent=5 // pred_region
        %s438 = ssub.s32 %s17, 2
        // Predicated region
        $region45: #{tpu_custom_call.1} parent=43 // pred_check
          %p439 = pneg %p93
        $region46: #{tpu_custom_call.1} parent=43 // pred_check_branch
          %441 = sbr.rel (%p439) target = $region48
        $region47: #{tpu_custom_call.1} parent=43 // pred_region
          %s442 = smul.u32 8, %s23
          %p443 = scmp.lt.s32.totalorder %s442, 15
          %s444 = scalar_select %p443, %s442, 15
          %s445 = smul.addr %s444, 4
          %s446 = scalar_lea.vmem %s2, %s445
        $region48: #{tpu_custom_call.1} parent=43 // pred_fallthru
          _
        // Predicated region
        $region49: #{tpu_custom_call.1} parent=43 // pred_check
          %p447 = pneg %p119
        $region50: #{tpu_custom_call.1} parent=43 // pred_check_branch
          %449 = sbr.rel (%p447) target = $region52
        $region51: #{tpu_custom_call.1} parent=43 // pred_region
          %s450 = sand.u32 %s104, 1
          %s451 = scalar_lea.sflag [#allocation3], %s450
          %s452 = sand.u32 %s104, 1
          %s453 = smul.addr %s452, 8
          %s454 = scalar_lea.vmem [#allocation2], %s453
          %456 = dma.done %s451, 128
        $region52: #{tpu_custom_call.1} parent=43 // pred_fallthru
          _
        // Predicated region
        $region53: #{tpu_custom_call.1} parent=43 // pred_check
          %p457 = pneg %p145
        $region54: #{tpu_custom_call.1} parent=43 // pred_check_branch
          %459 = sbr.rel (%p457) target = $region56
        $region55: #{tpu_custom_call.1} parent=43 // pred_region
          %s460 = sand.u32 %s130, 1
          %s461 = scalar_lea.sflag [#allocation5], %s460
          %s462 = sand.u32 %s130, 1
          %s463 = smul.addr %s462, 8
          %s464 = scalar_lea.vmem [#allocation4], %s463
          %466 = dma.done %s461, 128
        $region56: #{tpu_custom_call.1} parent=43 // pred_fallthru
          _
      $region44: #{tpu_custom_call.1} parent=5 // pred_fallthru
        _
    $region6: #{tpu_custom_call.1} parent=1 // loop_footer
      %s21 = sadd.s32 1, %s17
    $region7: #{tpu_custom_call.1} parent=1 // loop_footer_branch
      %16 = sbr.rel target = $region3
    $region8: #{tpu_custom_call.1} parent=1 // loop_exit
      _
    %467 = vsyncpa [#allocation3], 1
    %s468 = scalar_lea.sflag [#allocation3], 1
    %469 = vsyncpa %s468, 1
    %470 = vsyncpa [#allocation5], 1
    %s471 = scalar_lea.sflag [#allocation5], 1
    %472 = vsyncpa %s471, 1

</llo_original>
